<compile_context>
chip_gen: v6e
topology: v6e:2x2x1
jax: 0.10.0
libtpu: 0.0.40
codegen_flags: <defaults>
</compile_context>

<pallas_src>
import jax
import jax.numpy as jnp
import numpy as np
from jax.experimental import pallas as pl
from jax.experimental.pallas import tpu as pltpu


def _round_up(x, m):
    return (x + m - 1) // m * m


def _adaptive_embedding_kernel(ids_ref, table_ref, out_ref):
    ids = ids_ref[...]                                   # (TOK, 1) int32
    tok = ids.shape[0]
    v_pad = table_ref.shape[0]
    # Clusters are contiguous from 0, so the global token id is directly the
    # row index in the concatenated folded table.  Ids outside [0, V_total)
    # (e.g. token padding) match nothing -> zero rows.
    iota = jax.lax.broadcasted_iota(jnp.int32, (tok, v_pad), 1)
    one_hot = (ids == iota).astype(table_ref.dtype)      # 0/1 exact in bf16
    acc = jnp.dot(one_hot, table_ref[...],
                  preferred_element_type=jnp.float32)    # single MXU matmul
    out_ref[...] = acc.astype(out_ref.dtype)             # no pad columns


def adaptive_embedding(ids, emb_tables, proj_weights, proj_biases, cutoff,
                       embedding_dim, scale_grad=False, *, tok_block=512,
                       table_dtype=jnp.bfloat16, out_dtype=jnp.float32):
    """Forward pass of AdaptiveEmbedding.  ids: int array of any shape."""
    orig_shape = ids.shape
    D = int(embedding_dim)
    n_clusters = len(emb_tables)
    assert len(proj_weights) == n_clusters - 1
    cluster_sizes = [int(t.shape[0]) for t in emb_tables]

    # Sanity-check the cluster layout is contiguous from 0 (matches cutoff).
    lows = [0] + [int(c) for c in cutoff]
    csum = 0
    for i, s in enumerate(cluster_sizes):
        assert csum == lows[i], "cluster layout must be contiguous from 0"
        csum += s

    # Fold projection + bias (+ scale) into one (size_i, D) effective table per
    # cluster (one_hot @ (T @ W^T + b) == masked-scatter forward, since an
    # unmatched id produces an all-zero one-hot row), then concatenate so a
    # single matmul covers every cluster.
    folded = []
    for i, t in enumerate(emb_tables):
        t = jnp.asarray(t, jnp.float32)
        if i == 0:
            eff = t                                           # dim_0 == D
        else:
            w = jnp.asarray(proj_weights[i - 1], jnp.float32)  # (D, dim_i)
            b = jnp.asarray(proj_biases[i - 1], jnp.float32)   # (D,)
            eff = jnp.dot(t, w.T, precision=jax.lax.Precision.HIGHEST) + b[None, :]
            if scale_grad:
                # After projection the last dim is D -> factor D**0.5 / D.
                eff = eff * (D ** 0.5 / D)
        folded.append(eff)
    table = jnp.concatenate(folded, axis=0)
    v_total = int(table.shape[0])
    v_pad = _round_up(v_total, 128)          # tile/MXU-aligned K dimension
    if v_pad != v_total:
        table = jnp.pad(table, ((0, v_pad - v_total), (0, 0)))
    table = table.astype(table_dtype)

    ids_flat = ids.reshape(-1, 1).astype(jnp.int32)
    n_tok = ids_flat.shape[0]
    block = max(8, min(_round_up(int(tok_block), 8), _round_up(n_tok, 8)))
    n_pad = (-n_tok) % block
    if n_pad:
        # Pad with a valid id (0); padded rows are sliced off below.
        ids_flat = jnp.concatenate(
            [ids_flat, jnp.zeros((n_pad, 1), jnp.int32)], axis=0)
    n_tot = n_tok + n_pad
    grid = (n_tot // block,)

    # Generation-aware VMEM budget: ids/out blocks double-buffered, table
    # single-buffered, headroom for the one-hot temporary + f32 accumulator.
    t_item = jnp.dtype(table_dtype).itemsize
    o_item = jnp.dtype(out_dtype).itemsize
    est = 2 * block * 4                       # ids blocks (double-buffered)
    est += 2 * block * D * o_item             # out blocks (double-buffered)
    est += v_pad * D * t_item                 # resident folded table
    est += block * v_pad * t_item             # one-hot temporary
    est += block * D * 4                      # f32 accumulator
    try:
        vmem_cap = int(pltpu.get_tpu_info().vmem_capacity_bytes)
    except Exception:
        vmem_cap = 64 << 20                   # conservative: v7x per-core VMEM
    vmem_limit = int(min(max(2 * est, 32 << 20), (vmem_cap * 3) // 4))

    cost = pl.CostEstimate(
        flops=2 * n_tot * v_pad * D,
        transcendentals=0,
        bytes_accessed=n_tot * 4 + v_pad * D * t_item + n_tot * D * o_item)

    def build(single_buffer_table):
        if single_buffer_table:
            # Grid-invariant input: one buffer is enough (index_map constant).
            table_spec = pl.BlockSpec((v_pad, D), lambda i: (0, 0),
                                      pipeline_mode=pl.Buffered(1))
        else:
            table_spec = pl.BlockSpec((v_pad, D), lambda i: (0, 0))
        return pl.pallas_call(
            _adaptive_embedding_kernel,
            out_shape=jax.ShapeDtypeStruct((n_tot, D), out_dtype),
            grid=grid,
            in_specs=[pl.BlockSpec((block, 1), lambda i: (i, 0)), table_spec],
            out_specs=pl.BlockSpec((block, D), lambda i: (i, 0)),
            compiler_params=pltpu.CompilerParams(
                dimension_semantics=("parallel",),
                vmem_limit_bytes=vmem_limit),
            cost_estimate=cost,
        )

    out = None
    last_err = None
    for single_buf in (True, False):
        try:
            out = build(single_buf)(ids_flat, table)
            break
        except Exception as e:   # pipeline_mode / Buffered(1) unsupported -> retry
            last_err = e
    if out is None:
        raise last_err

    if n_pad:
        out = out[:n_tok]
    return out.reshape(*orig_shape, D)


if __name__ == "__main__":
    # Module config (all clusters non-empty).
    num_embeddings = 24
    embedding_dim = 32
    padding_idx = 1
    cutoff = [8, 16]
    factor = 2          # int so dim = embedding_dim // factor**i stays integral
    scale_grad = False

    cluster_sizes = [cutoff[0]]
    for i in range(1, len(cutoff)):
        cluster_sizes.append(cutoff[i] - cutoff[i - 1])
    cluster_sizes.append(num_embeddings - cutoff[-1])
    dims = [embedding_dim // factor ** i for i in range(len(cluster_sizes))]

    key = jax.random.PRNGKey(0)
    keys = jax.random.split(key, 2 * len(cluster_sizes) + 2)

    emb_tables, proj_weights, proj_biases = [], [], []
    for i, (cs, d) in enumerate(zip(cluster_sizes, dims)):
        w = jax.random.normal(keys[i], (cs, d), jnp.float32)      # ~ N(0, 1)
        w = w.at[padding_idx].set(0.0)   # nn.Embedding zeroes the padding row
        emb_tables.append(w)
        if i > 0:
            pw = jax.random.normal(keys[len(cluster_sizes) + i],
                                   (embedding_dim, d), jnp.float32) * (d ** -0.5)
            pb = jnp.zeros((embedding_dim,), jnp.float32)
            proj_weights.append(pw)
            proj_biases.append(pb)

    # Pure-JAX reference (mirrors the PyTorch forward).
    def reference(ids):
        res = jnp.zeros((*ids.shape, embedding_dim), jnp.float32)
        n = len(emb_tables)
        for i in range(n):
            if i == 0:
                mask = ids < cutoff[0]; idx = ids
            elif i == n - 1:
                mask = ids >= cutoff[-1]; idx = ids - cutoff[-1]
            else:
                mask = (ids >= cutoff[i - 1]) & (ids < cutoff[i])
                idx = ids - cutoff[i - 1]
            e = jnp.take(emb_tables[i],
                         jnp.clip(idx, 0, cluster_sizes[i] - 1), axis=0)
            if i > 0:
                e = jnp.dot(e, proj_weights[i - 1].T,
                            precision=jax.lax.Precision.HIGHEST) + proj_biases[i - 1]
                if scale_grad:
                    e = e * (embedding_dim ** 0.5 / embedding_dim)
            res = jnp.where(mask[..., None], e, res)
        return res

    # Check 1: default bf16 folded table (exercises token padding, 1 block).
    B, T = 2, 8
    ids = jax.random.randint(keys[-2], (B, T), 0, num_embeddings, jnp.int32)
    out = adaptive_embedding(ids, emb_tables, proj_weights, proj_biases,
                             cutoff, embedding_dim, scale_grad)
    out = jax.block_until_ready(out)
    assert out.shape == (B, T, embedding_dim) and out.dtype == jnp.float32
    ref = reference(ids)
    if not np.allclose(np.asarray(out), np.asarray(ref), atol=5e-2, rtol=1e-2):
        raise AssertionError(
            f"bf16 max abs err {np.max(np.abs(np.asarray(out) - np.asarray(ref)))}")

    # Check 2: multi-block grid (384 tokens, tok_block=128 -> 3 blocks),
    # f32 table to verify exactness of the gather logic.
    B2, T2 = 4, 96
    ids2 = jax.random.randint(keys[-1], (B2, T2), 0, num_embeddings, jnp.int32)
    out2 = adaptive_embedding(ids2, emb_tables, proj_weights, proj_biases,
                              cutoff, embedding_dim, scale_grad,
                              tok_block=128, table_dtype=jnp.float32)
    out2 = jax.block_until_ready(out2)
    ref2 = reference(ids2)
    if not np.allclose(np.asarray(out2), np.asarray(ref2), atol=1e-4):
        raise AssertionError(
            f"f32 max abs err {np.max(np.abs(np.asarray(out2) - np.asarray(ref2)))}")

    print("KERNEL_OK")
</pallas_src>

<mosaic_0001>
module attributes {stable_mosaic.version = 11 : i64} {
  func.func @_adaptive_embedding_kernel(%arg0: i32, %arg1: memref<16x1xi32, #tpu.memory_space<vmem>>, %arg2: memref<128x32xbf16, #tpu.memory_space<vmem>>, %arg3: memref<16x32xf32, #tpu.memory_space<vmem>>) attributes {dimension_semantics = [#tpu.dimension_semantics<parallel>], iteration_bounds = array<i64: 1>, scalar_prefetch = 0 : i64, scratch_operands = 0 : i64, tpu.core_type = #tpu.core_type<tc>, window_params = [{transform_indices = @transform_0, window_bounds = array<i64: 16, 1>}, {pipeline_mode = #tpu.pipeline_mode<synchronous>, transform_indices = @transform_1, window_bounds = array<i64: 128, 32>}, {transform_indices = @transform_2, window_bounds = array<i64: 16, 32>}]} {
    %c0 = arith.constant 0 : index
    %c0_0 = arith.constant 0 : index
    %0 = vector.load %arg1[%c0, %c0_0] : memref<16x1xi32, #tpu.memory_space<vmem>>, vector<16x1xi32>
    %1 = tpu.iota {dimensions = array<i32: 1>} : vector<16x128xi32>
    %2 = vector.broadcast %0 : vector<16x1xi32> to vector<16x128xi32>
    %3 = arith.cmpi eq, %2, %1 : vector<16x128xi32>
    %4 = arith.extui %3 : vector<16x128xi1> to vector<16x128xi32>
    %5 = arith.sitofp %4 : vector<16x128xi32> to vector<16x128xf32>
    %6 = arith.truncf %5 : vector<16x128xf32> to vector<16x128xbf16>
    %c0_1 = arith.constant 0 : index
    %c0_2 = arith.constant 0 : index
    %7 = vector.load %arg2[%c0_1, %c0_2] : memref<128x32xbf16, #tpu.memory_space<vmem>>, vector<128x32xbf16>
    %cst = arith.constant dense<0.000000e+00> : vector<16x32xf32>
    %8 = tpu.matmul %6, %7, %cst {dimension_numbers = #tpu.dot_dimension_numbers<[1], [0], [0], [1], [0, 0, 1, 1], [], []>} : vector<16x128xbf16>, vector<128x32xbf16>, vector<16x32xf32> -> vector<16x32xf32>
    %c0_3 = arith.constant 0 : index
    %c0_4 = arith.constant 0 : index
    %9 = vector.load %arg3[%c0_3, %c0_4] : memref<16x32xf32, #tpu.memory_space<vmem>>, vector<16x32xf32>
    tpu.vector_store %arg3[%c0_3, %c0_4], %8 {strides = array<i32>} : memref<16x32xf32, #tpu.memory_space<vmem>>, vector<16x32xf32>,
    return
  }
  func.func @transform_0(%arg0: i32) -> (i32, i32) {
    %c0_i32 = arith.constant 0 : i32
    %c0_i32_0 = arith.constant 0 : i32
    return %arg0, %c0_i32 : i32, i32
  }
  func.func @transform_1(%arg0: i32) -> (i32, i32) {
    %c0_i32 = arith.constant 0 : i32
    %c0_i32_0 = arith.constant 0 : i32
    %c0_i32_1 = arith.constant 0 : i32
    return %c0_i32, %c0_i32_0 : i32, i32
  }
  func.func @transform_2(%arg0: i32) -> (i32, i32) {
    %c0_i32 = arith.constant 0 : i32
    %c0_i32_0 = arith.constant 0 : i32
    return %arg0, %c0_i32 : i32, i32
  }
}

module attributes {stable_mosaic.version = 11 : i64} {
  func.func @_adaptive_embedding_kernel(%arg0: i32, %arg1: memref<16x1xi32, #tpu.memory_space<vmem>>, %arg2: memref<128x32xbf16, #tpu.memory_space<vmem>>, %arg3: memref<16x32xf32, #tpu.memory_space<vmem>>) attributes {dimension_semantics = [#tpu.dimension_semantics<parallel>], iteration_bounds = array<i64: 1>, scalar_prefetch = 0 : i64, scratch_operands = 0 : i64, tpu.core_type = #tpu.core_type<tc>, window_params = [{transform_indices = @transform_0, window_bounds = array<i64: 16, 1>}, {pipeline_mode = #tpu.pipeline_mode<synchronous>, transform_indices = @transform_1, window_bounds = array<i64: 128, 32>}, {transform_indices = @transform_2, window_bounds = array<i64: 16, 32>}]} {
    %c0 = arith.constant 0 : index
    %c0_0 = arith.constant 0 : index
    %0 = vector.load %arg1[%c0, %c0_0] : memref<16x1xi32, #tpu.memory_space<vmem>>, vector<16x1xi32>
    %1 = tpu.iota {dimensions = array<i32: 1>} : vector<16x128xi32>
    %2 = vector.broadcast %0 : vector<16x1xi32> to vector<16x128xi32>
    %3 = arith.cmpi eq, %2, %1 : vector<16x128xi32>
    %4 = arith.extui %3 : vector<16x128xi1> to vector<16x128xi32>
    %5 = arith.sitofp %4 : vector<16x128xi32> to vector<16x128xf32>
    %6 = arith.truncf %5 : vector<16x128xf32> to vector<16x128xbf16>
    %c0_1 = arith.constant 0 : index
    %c0_2 = arith.constant 0 : index
    %7 = vector.load %arg2[%c0_1, %c0_2] : memref<128x32xbf16, #tpu.memory_space<vmem>>, vector<128x32xbf16>
    %cst = arith.constant dense<0.000000e+00> : vector<16x32xf32>
    %8 = tpu.matmul %6, %7, %cst {dimension_numbers = #tpu.dot_dimension_numbers<[1], [0], [0], [1], [0, 0, 1, 1], [], []>} : vector<16x128xbf16>, vector<128x32xbf16>, vector<16x32xf32> -> vector<16x32xf32>
    %c0_3 = arith.constant 0 : index
    %c0_4 = arith.constant 0 : index
    %9 = vector.load %arg3[%c0_3, %c0_4] : memref<16x32xf32, #tpu.memory_space<vmem>>, vector<16x32xf32>
    tpu.vector_store %arg3[%c0_3, %c0_4], %8 {strides = array<i32>} : memref<16x32xf32, #tpu.memory_space<vmem>>, vector<16x32xf32>,
    return
  }
  func.func @transform_0(%arg0: i32) -> (i32, i32) {
    %c0_i32 = arith.constant 0 : i32
    %c0_i32_0 = arith.constant 0 : i32
    return %arg0, %c0_i32 : i32, i32
  }
  func.func @transform_1(%arg0: i32) -> (i32, i32) {
    %c0_i32 = arith.constant 0 : i32
    %c0_i32_0 = arith.constant 0 : i32
    %c0_i32_1 = arith.constant 0 : i32
    return %c0_i32, %c0_i32_0 : i32, i32
  }
  func.func @transform_2(%arg0: i32) -> (i32, i32) {
    %c0_i32 = arith.constant 0 : i32
    %c0_i32_0 = arith.constant 0 : i32
    return %arg0, %c0_i32 : i32, i32
  }
}

</mosaic_0001>

<llo_original>
// kernel: tpu_custom_call.1
$region0: #{tpu_custom_call.1}
  #allocation0 [shape = 'u32[]', space=smem, size = 0x4, offset = 0x4, fixed_abs, tag = 'smem constant byte address 0x4 - core index']
  #allocation1 [shape = 'u32[144,128]{1,0:T(1,128)}', space=vmem, size = 0x12000, scoped, tag = 'internal scratch']
  %s0 = inlined_call_operand.vmem [shape: s32[16,1], index: 0, kind: input, shape index: {}]
  %s1 = inlined_call_operand.vmem [shape: bf16[128,32], index: 1, kind: input, shape index: {}]
  %s2 = inlined_call_operand.hbm [shape: f32[16,32], index: 2, kind: output, shape index: {}]
  %s3 = sld [smem:[#allocation0]]
  $region18: #{tpu_custom_call.1} parent=0
    _
  %s5 = ssub.s32 1, %s3
  %s6 = scalar_select 0, %s5, %s3
  $region1: #{tpu_custom_call.1} parent=0
    #allocation2 [shape = 'u8[8192]{0}', space=vmem, size = 0x2000, scoped, tag = 'output window, operand 0, single buffered']
    #allocation3 [shape = 's32[1]{0}', space=sflag, size = 0x4, scoped, tag = 'scoped memory for tpu_custom_call.1']
    %7 = vsyncpa [#allocation3], 0
    // Predicated region
    $region2: #{tpu_custom_call.1} parent=1 // pred_check
      _
    $region3: #{tpu_custom_call.1} parent=1 // pred_check_branch
      %9 = sbr.rel (0) target = $region5
    $region4: #{tpu_custom_call.1} parent=1 // pred_region
      _
    $region5: #{tpu_custom_call.1} parent=1 // pred_fallthru
      _
    // Predicated region
    $region6: #{tpu_custom_call.1} parent=1 // pred_check
      _
    $region7: #{tpu_custom_call.1} parent=1 // pred_check_branch
      %11 = sbr.rel (0) target = $region9
    $region8: #{tpu_custom_call.1} parent=1 // pred_region
      _
    $region9: #{tpu_custom_call.1} parent=1 // pred_fallthru
      _
    %v13 = vld [vmem:[%s0] sm:$0xff]
    %v14 = vld [vmem:[%s0 + $0x8] sm:$0xff]
    %v15 = vlaneseq
    %v16 = vand.u32 %v15, 127
    %17 = vset.pattern.permute.xlu0 0
    %18 = vperm.xlu0 %17, %v13
    %v19 = vpop.permute.xlu0 %18
    %20 = vset.pattern.permute.xlu0 0
    %21 = vperm.xlu0 %20, %v14
    %v22 = vpop.permute.xlu0 %21
    %vm23 = vcmp.eq.s32.totalorder %v19, %v16
    %vm24 = vcmp.eq.s32.totalorder %v22, %v16
    %v25 = vsel %vm23, 1, 0
    %v26 = vsel %vm24, 1, 0
    %v27 = vcvt.s32.f32 %v25
    %v28 = vcvt.s32.f32 %v26
    %v29 = vpack.c.bf16 %v28, %v27
    %v30 = vld [vmem:[%s1] sm:$0xf]
    %v31 = vld [vmem:[%s1 + $0x4] sm:$0xf]
    %v32 = vld [vmem:[%s1 + $0x8] sm:$0xf]
    %v33 = vld [vmem:[%s1 + $0xc] sm:$0xf]
    %v34 = vld [vmem:[%s1 + $0x10] sm:$0xf]
    %v35 = vld [vmem:[%s1 + $0x14] sm:$0xf]
    %v36 = vld [vmem:[%s1 + $0x18] sm:$0xf]
    %v37 = vld [vmem:[%s1 + $0x1c] sm:$0xf]
    %v38 = vld [vmem:[%s1 + $0x20] sm:$0xf]
    %v39 = vld [vmem:[%s1 + $0x24] sm:$0xf]
    %v40 = vld [vmem:[%s1 + $0x28] sm:$0xf]
    %v41 = vld [vmem:[%s1 + $0x2c] sm:$0xf]
    %v42 = vld [vmem:[%s1 + $0x30] sm:$0xf]
    %v43 = vld [vmem:[%s1 + $0x34] sm:$0xf]
    %v44 = vld [vmem:[%s1 + $0x38] sm:$0xf]
    %v45 = vld [vmem:[%s1 + $0x3c] sm:$0xf]
    %v62 = vunpack.c.l.b16 %v30
    %v63 = vunpack.c.l.b16 %v31
    %v64 = vunpack.c.l.b16 %v32
    %v65 = vunpack.c.l.b16 %v33
    %v66 = vunpack.c.l.b16 %v34
    %v67 = vunpack.c.l.b16 %v35
    %v68 = vunpack.c.l.b16 %v36
    %v69 = vunpack.c.l.b16 %v37
    %v70 = vunpack.c.l.b16 %v38
    %v71 = vunpack.c.l.b16 %v39
    %v72 = vunpack.c.l.b16 %v40
    %v73 = vunpack.c.l.b16 %v41
    %v74 = vunpack.c.l.b16 %v42
    %v75 = vunpack.c.l.b16 %v43
    %v76 = vunpack.c.l.b16 %v44
    %v77 = vunpack.c.l.b16 %v45
    %v78 = vpack.c.b16 %v63, %v62
    %v79 = vpack.c.b16 %v65, %v64
    %v80 = vpack.c.b16 %v67, %v66
    %v81 = vpack.c.b16 %v69, %v68
    %v82 = vpack.c.b16 %v71, %v70
    %v83 = vpack.c.b16 %v73, %v72
    %v84 = vpack.c.b16 %v75, %v74
    %v85 = vpack.c.b16 %v77, %v76
    %94 = vmatprep.subr.bf16.mxu0 0
    %95 = vmatpush1.bf16.msra.mxu0 %v85
    %96 = vmatprep.subr.bf16.mxu0 0
    %97 = vmatpush1.bf16.msra.mxu0 %v84
    %98 = vmatprep.subr.bf16.mxu0 0
    %99 = vmatpush1.bf16.msra.mxu0 %v83
    %100 = vmatprep.subr.bf16.mxu0 0
    %101 = vmatpush1.bf16.msra.mxu0 %v82
    %102 = vmatprep.subr.bf16.mxu0 0
    %103 = vmatpush1.bf16.msra.mxu0 %v81
    %104 = vmatprep.subr.bf16.mxu0 0
    %105 = vmatpush1.bf16.msra.mxu0 %v80
    %106 = vmatprep.subr.bf16.mxu0 0
    %107 = vmatpush1.bf16.msra.mxu0 %v79
    %108 = vmatprep.subr.bf16.mxu0 0
    %109 = vmatpush1.bf16.msra.mxu0 %v78
    %110 = vmatprep.subr.bf16.mxu0 0
    %111 = vmatpush2.bf16.msra.mxu0 0
    %112 = vmatprep.subr.bf16.mxu0 0
    %113 = vmatpush2.bf16.msra.mxu0 0
    %114 = vmatprep.subr.bf16.mxu0 0
    %115 = vmatpush2.bf16.msra.mxu0 0
    %116 = vmatprep.subr.bf16.mxu0 0
    %117 = vmatpush2.bf16.msra.mxu0 0
    %118 = vmatprep.subr.bf16.mxu0 0
    %119 = vmatpush2.bf16.msra.mxu0 0
    %120 = vmatprep.subr.bf16.mxu0 0
    %121 = vmatpush2.bf16.msra.mxu0 0
    %122 = vmatprep.subr.bf16.mxu0 0
    %123 = vmatpush2.bf16.msra.mxu0 0
    %124 = vmatprep.subr.bf16.mxu0 0
    %125 = vmatpush2.bf16.msra.mxu0 0
    %126 = vmatprep.mubr.bf16.mxu0 0
    %127 = vmatmul.mubr.bf16.gmra.mxu0 %v29
    %v128 = vpop.f32.mrf.mxu0
    %v129 = vadd.f32 0.0, %v128
    %v130 = vpop.f32.mrf.mxu0
    %v131 = vpop.f32.mrf.mxu0
    %v132 = vadd.f32 0.0, %v131
    %v133 = vpop.f32.mrf.mxu0
    %134 = vdwg.mxu0
    %vm135 = vcmask 261120
    %136 = vst.msk [vmem:[#allocation2] sm:$0xff] %vm135, %v129
    %137 = vst.msk [vmem:[#allocation2 + $0x8] sm:$0xff] %vm135, %v132
    // Predicated region
    $region10: #{tpu_custom_call.1} parent=1 // pred_check
      _
    $region11: #{tpu_custom_call.1} parent=1 // pred_check_branch
      %139 = sbr.rel (0) target = $region13
    $region12: #{tpu_custom_call.1} parent=1 // pred_region
      %s141 = ssub.s32 256, 256
      %142 = vsyncadd [#allocation3], %s141
      %s143 = sshll.u32 [#allocation2], 4
      %s144 = int_to_ptr.vmem [resolvable:$true] %s143
      %149 = dma.vmem_to_hbm [thread:$0]  %s144, 256, %s2, [#allocation3], 128, 128, 8
    $region13: #{tpu_custom_call.1} parent=1 // pred_fallthru
      _
    // Predicated region
    $region14: #{tpu_custom_call.1} parent=1 // pred_check
      _
    $region15: #{tpu_custom_call.1} parent=1 // pred_check_branch
      %151 = sbr.rel (0) target = $region17
    $region16: #{tpu_custom_call.1} parent=1 // pred_region
      %152 = dma.done [#allocation3], 256
    $region17: #{tpu_custom_call.1} parent=1 // pred_fallthru
      _
    %153 = vsyncpa [#allocation3], 1

// kernel: tpu_custom_call.1
$region0: #{tpu_custom_call.1}
  #allocation0 [shape = 'u32[]', space=smem, size = 0x4, offset = 0x4, fixed_abs, tag = 'smem constant byte address 0x4 - core index']
  #allocation1 [shape = 'u32[144,128]{1,0:T(1,128)}', space=vmem, size = 0x12000, scoped, tag = 'internal scratch']
  %s0 = inlined_call_operand.vmem [shape: s32[16,1], index: 0, kind: input, shape index: {}]
  %s1 = inlined_call_operand.vmem [shape: bf16[128,32], index: 1, kind: input, shape index: {}]
  %s2 = inlined_call_operand.hbm [shape: f32[16,32], index: 2, kind: output, shape index: {}]
  %s3 = sld [smem:[#allocation0]]
  $region18: #{tpu_custom_call.1} parent=0
    _
  %s5 = ssub.s32 1, %s3
  %s6 = scalar_select 0, %s5, %s3
  $region1: #{tpu_custom_call.1} parent=0
    #allocation2 [shape = 'u8[8192]{0}', space=vmem, size = 0x2000, scoped, tag = 'output window, operand 0, single buffered']
    #allocation3 [shape = 's32[1]{0}', space=sflag, size = 0x4, scoped, tag = 'scoped memory for tpu_custom_call.1']
    %7 = vsyncpa [#allocation3], 0
    // Predicated region
    $region2: #{tpu_custom_call.1} parent=1 // pred_check
      _
    $region3: #{tpu_custom_call.1} parent=1 // pred_check_branch
      %9 = sbr.rel (0) target = $region5
    $region4: #{tpu_custom_call.1} parent=1 // pred_region
      _
    $region5: #{tpu_custom_call.1} parent=1 // pred_fallthru
      _
    // Predicated region
    $region6: #{tpu_custom_call.1} parent=1 // pred_check
      _
    $region7: #{tpu_custom_call.1} parent=1 // pred_check_branch
      %11 = sbr.rel (0) target = $region9
    $region8: #{tpu_custom_call.1} parent=1 // pred_region
      _
    $region9: #{tpu_custom_call.1} parent=1 // pred_fallthru
      _
    %v13 = vld [vmem:[%s0] sm:$0xff]
    %v14 = vld [vmem:[%s0 + $0x8] sm:$0xff]
    %v15 = vlaneseq
    %v16 = vand.u32 %v15, 127
    %17 = vset.pattern.permute.xlu0 0
    %18 = vperm.xlu0 %17, %v13
    %v19 = vpop.permute.xlu0 %18
    %20 = vset.pattern.permute.xlu0 0
    %21 = vperm.xlu0 %20, %v14
    %v22 = vpop.permute.xlu0 %21
    %vm23 = vcmp.eq.s32.totalorder %v19, %v16
    %vm24 = vcmp.eq.s32.totalorder %v22, %v16
    %v25 = vsel %vm23, 1, 0
    %v26 = vsel %vm24, 1, 0
    %v27 = vcvt.s32.f32 %v25
    %v28 = vcvt.s32.f32 %v26
    %v29 = vpack.c.bf16 %v28, %v27
    %v30 = vld [vmem:[%s1] sm:$0xf]
    %v31 = vld [vmem:[%s1 + $0x4] sm:$0xf]
    %v32 = vld [vmem:[%s1 + $0x8] sm:$0xf]
    %v33 = vld [vmem:[%s1 + $0xc] sm:$0xf]
    %v34 = vld [vmem:[%s1 + $0x10] sm:$0xf]
    %v35 = vld [vmem:[%s1 + $0x14] sm:$0xf]
    %v36 = vld [vmem:[%s1 + $0x18] sm:$0xf]
    %v37 = vld [vmem:[%s1 + $0x1c] sm:$0xf]
    %v38 = vld [vmem:[%s1 + $0x20] sm:$0xf]
    %v39 = vld [vmem:[%s1 + $0x24] sm:$0xf]
    %v40 = vld [vmem:[%s1 + $0x28] sm:$0xf]
    %v41 = vld [vmem:[%s1 + $0x2c] sm:$0xf]
    %v42 = vld [vmem:[%s1 + $0x30] sm:$0xf]
    %v43 = vld [vmem:[%s1 + $0x34] sm:$0xf]
    %v44 = vld [vmem:[%s1 + $0x38] sm:$0xf]
    %v45 = vld [vmem:[%s1 + $0x3c] sm:$0xf]
    %v62 = vunpack.c.l.b16 %v30
    %v63 = vunpack.c.l.b16 %v31
    %v64 = vunpack.c.l.b16 %v32
    %v65 = vunpack.c.l.b16 %v33
    %v66 = vunpack.c.l.b16 %v34
    %v67 = vunpack.c.l.b16 %v35
    %v68 = vunpack.c.l.b16 %v36
    %v69 = vunpack.c.l.b16 %v37
    %v70 = vunpack.c.l.b16 %v38
    %v71 = vunpack.c.l.b16 %v39
    %v72 = vunpack.c.l.b16 %v40
    %v73 = vunpack.c.l.b16 %v41
    %v74 = vunpack.c.l.b16 %v42
    %v75 = vunpack.c.l.b16 %v43
    %v76 = vunpack.c.l.b16 %v44
    %v77 = vunpack.c.l.b16 %v45
    %v78 = vpack.c.b16 %v63, %v62
    %v79 = vpack.c.b16 %v65, %v64
    %v80 = vpack.c.b16 %v67, %v66
    %v81 = vpack.c.b16 %v69, %v68
    %v82 = vpack.c.b16 %v71, %v70
    %v83 = vpack.c.b16 %v73, %v72
    %v84 = vpack.c.b16 %v75, %v74
    %v85 = vpack.c.b16 %v77, %v76
    %94 = vmatprep.subr.bf16.mxu0 0
    %95 = vmatpush1.bf16.msra.mxu0 %v85
    %96 = vmatprep.subr.bf16.mxu0 0
    %97 = vmatpush1.bf16.msra.mxu0 %v84
    %98 = vmatprep.subr.bf16.mxu0 0
    %99 = vmatpush1.bf16.msra.mxu0 %v83
    %100 = vmatprep.subr.bf16.mxu0 0
    %101 = vmatpush1.bf16.msra.mxu0 %v82
    %102 = vmatprep.subr.bf16.mxu0 0
    %103 = vmatpush1.bf16.msra.mxu0 %v81
    %104 = vmatprep.subr.bf16.mxu0 0
    %105 = vmatpush1.bf16.msra.mxu0 %v80
    %106 = vmatprep.subr.bf16.mxu0 0
    %107 = vmatpush1.bf16.msra.mxu0 %v79
    %108 = vmatprep.subr.bf16.mxu0 0
    %109 = vmatpush1.bf16.msra.mxu0 %v78
    %110 = vmatprep.subr.bf16.mxu0 0
    %111 = vmatpush2.bf16.msra.mxu0 0
    %112 = vmatprep.subr.bf16.mxu0 0
    %113 = vmatpush2.bf16.msra.mxu0 0
    %114 = vmatprep.subr.bf16.mxu0 0
    %115 = vmatpush2.bf16.msra.mxu0 0
    %116 = vmatprep.subr.bf16.mxu0 0
    %117 = vmatpush2.bf16.msra.mxu0 0
    %118 = vmatprep.subr.bf16.mxu0 0
    %119 = vmatpush2.bf16.msra.mxu0 0
    %120 = vmatprep.subr.bf16.mxu0 0
    %121 = vmatpush2.bf16.msra.mxu0 0
    %122 = vmatprep.subr.bf16.mxu0 0
    %123 = vmatpush2.bf16.msra.mxu0 0
    %124 = vmatprep.subr.bf16.mxu0 0
    %125 = vmatpush2.bf16.msra.mxu0 0
    %126 = vmatprep.mubr.bf16.mxu0 0
    %127 = vmatmul.mubr.bf16.gmra.mxu0 %v29
    %v128 = vpop.f32.mrf.mxu0
    %v129 = vadd.f32 0.0, %v128
    %v130 = vpop.f32.mrf.mxu0
    %v131 = vpop.f32.mrf.mxu0
    %v132 = vadd.f32 0.0, %v131
    %v133 = vpop.f32.mrf.mxu0
    %134 = vdwg.mxu0
    %vm135 = vcmask 261120
    %136 = vst.msk [vmem:[#allocation2] sm:$0xff] %vm135, %v129
    %137 = vst.msk [vmem:[#allocation2 + $0x8] sm:$0xff] %vm135, %v132
    // Predicated region
    $region10: #{tpu_custom_call.1} parent=1 // pred_check
      _
    $region11: #{tpu_custom_call.1} parent=1 // pred_check_branch
      %139 = sbr.rel (0) target = $region13
    $region12: #{tpu_custom_call.1} parent=1 // pred_region
      %s141 = ssub.s32 256, 256
      %142 = vsyncadd [#allocation3], %s141
      %s143 = sshll.u32 [#allocation2], 4
      %s144 = int_to_ptr.vmem [resolvable:$true] %s143
      %149 = dma.vmem_to_hbm [thread:$0]  %s144, 256, %s2, [#allocation3], 128, 128, 8
    $region13: #{tpu_custom_call.1} parent=1 // pred_fallthru
      _
    // Predicated region
    $region14: #{tpu_custom_call.1} parent=1 // pred_check
      _
    $region15: #{tpu_custom_call.1} parent=1 // pred_check_branch
      %151 = sbr.rel (0) target = $region17
    $region16: #{tpu_custom_call.1} parent=1 // pred_region
      %152 = dma.done [#allocation3], 256
    $region17: #{tpu_custom_call.1} parent=1 // pred_fallthru
      _
    %153 = vsyncpa [#allocation3], 1

</llo_original>
